<compile_context>
chip_gen: v7x
topology: tpu7x:2x2x1
jax: 0.10.0
libtpu: 0.0.40
codegen_flags: <defaults>
</compile_context>

<pallas_src>
import functools

import jax
import jax.numpy as jnp
from jax import lax
from jax.experimental import pallas as pl
from jax.experimental.pallas import tpu as pltpu


def gat_fused_kernel(h_ref, wf_ref, wsrc_ref, wdstT_ref, out_ref, *, heads, f_out):
    """Single grid step: all heads fused, lane-dense projection and output."""
    h = h_ref[...]                                                     # (N, F_in) bf16

    # Heads-fused projection: one lane-dense MXU push, f32 accumulation.
    hp = jnp.dot(h, wf_ref[...], preferred_element_type=jnp.float32)   # (N, H*F_out) f32

    # GAT score terms for all heads at once. Both dots contract the LAST axis
    # of each operand (trans_b form), so the node axis lands directly where the
    # outer sum needs it (columns for "src", rows for "dst") - no transposes.
    sc_src = jnp.dot(h, wsrc_ref[...], preferred_element_type=jnp.float32)   # (N, H)
    sc_dst = lax.dot_general(wdstT_ref[...], h, (((1,), (1,)), ((), ())),
                             preferred_element_type=jnp.float32)             # (H, N)

    hp_bf = hp.astype(jnp.bfloat16)      # bf16 operand for the aggregation matmuls
    cols = []
    for hd in range(heads):              # heads is tiny & static -> fully unrolled
        # e[i, j] = a_src . hp[i]  +  a_dst . hp[j]   (outer sum)
        e = sc_src[:, hd:hd + 1] + sc_dst[hd:hd + 1, :]                      # (N, N)
        # Max-stabilised softmax over neighbours, kept in f32 (VPU/XLU/EUP).
        e = e - jnp.max(e, axis=-1, keepdims=True)
        p = jnp.exp(e)
        attn = p * pl.reciprocal(jnp.sum(p, axis=-1, keepdims=True), approx=True)
        # Weighted aggregation of this head's projected features (bf16 MXU, f32 acc).
        hp_h = hp_bf[:, hd * f_out:(hd + 1) * f_out]                         # (N, F_out)
        cols.append(jnp.dot(attn.astype(jnp.bfloat16), hp_h,
                            preferred_element_type=jnp.float32))
    # Single lane-dense (N, H*F_out) store (per-node head-concat layout).
    out_ref[...] = jnp.concatenate(cols, axis=-1).astype(out_ref.dtype)


@jax.jit
def gat_forward(h, adj, W, a):
    """h: (N, F_in); adj: unused by the original forward; W: (H, F_in, F_out);
    a: (H, 2*F_out, 1). Returns (N, H*F_out) matching torch's h_out.view(N, -1)."""
    del adj   # accepted for signature parity; the original forward never uses it
    H, F_in, F_out = W.shape
    N = h.shape[0]

    # ---- parameter re-layout in the wrapper (outside the kernel) ----
    # Heads-fused, lane-dense projection matrix: (F_in, H*F_out).
    w_fused = jnp.transpose(W, (1, 0, 2)).reshape(F_in, H * F_out)
    # Fold the attention-score vectors through W so the per-node score terms
    # become direct projections of h (a . (h@W) == h . (W@a), same math).
    a_src = a[:, :F_out, 0]                                  # (H, F_out)
    a_dst = a[:, F_out:, 0]                                  # (H, F_out)
    w_src = jnp.einsum("hio,ho->ih", W, a_src)               # (F_in, H)
    w_dstT = jnp.einsum("hio,ho->hi", W, a_dst)              # (H, F_in)

    # bf16 MXU operands (accumulation stays f32 inside the kernel).
    h_bf = h.astype(jnp.bfloat16)
    w_fused = w_fused.astype(jnp.bfloat16)
    w_src = w_src.astype(jnp.bfloat16)
    w_dstT = w_dstT.astype(jnp.bfloat16)

    vmem = pltpu.MemorySpace.VMEM
    cost = pl.CostEstimate(
        flops=(2 * N * F_in * H * F_out      # heads-fused projection
               + 4 * N * F_in * H            # src/dst score projections
               + 2 * H * N * N * F_out       # attention aggregation
               + 6 * H * N * N),             # softmax elementwise
        transcendentals=H * N * N + H * N,   # exp + reciprocal
        bytes_accessed=(2 * (N * F_in + F_in * H * F_out + 2 * F_in * H)
                        + 4 * N * H * F_out),
    )

    out_dense = pl.pallas_call(
        functools.partial(gat_fused_kernel, heads=H, f_out=F_out),
        in_specs=[pl.BlockSpec(memory_space=vmem)] * 4,
        out_specs=pl.BlockSpec(memory_space=vmem),
        out_shape=jax.ShapeDtypeStruct((N, H * F_out), jnp.float32),
        cost_estimate=cost,
    )(h_bf, w_fused, w_src, w_dstT)

    # out_dense[n, hd*F_out + o] == h_out[hd, n, o] (per-node head concat).
    # torch returns the raw view of the contiguous (H, N, F_out) tensor, which
    # interleaves heads and node groups; reproduce that exact semantics with a
    # tiny XLA permute in the wrapper (outside the kernel, free at this size).
    h_out = jnp.transpose(out_dense.reshape(N, H, F_out), (1, 0, 2))   # (H, N, F_out)
    return h_out.reshape(N, H * F_out)


if __name__ == "__main__":
    key = jax.random.PRNGKey(0)
    k_h, k_w, k_a = jax.random.split(key, 3)

    N, F_in, F_out, H = 8, 64, 32, 4          # H*F_out = 128 -> lane-dense output

    h = jax.random.normal(k_h, (N, F_in), jnp.float32)
    adj = jnp.ones((N, N), jnp.float32)       # unused by the original forward

    # xavier-uniform-style init
    bound_w = (6.0 / (F_in * F_out + H * F_out)) ** 0.5
    W = jax.random.uniform(k_w, (H, F_in, F_out), jnp.float32, -bound_w, bound_w)
    bound_a = (6.0 / (2 * F_out + 1)) ** 0.5
    a = jax.random.uniform(k_a, (H, 2 * F_out, 1), jnp.float32, -bound_a, bound_a)

    out = gat_forward(h, adj, W, a)
    jax.block_until_ready(out)

    # Pure-JAX reference of the same math (bf16 MXU operands + approx reciprocal
    # in the kernel -> loose tolerance).
    hp_ref = jnp.einsum("nf,hfo->hno", h, W)
    a_s, a_d = a[:, :F_out, 0], a[:, F_out:, 0]
    e_ref = (jnp.einsum("hno,ho->hn", hp_ref, a_s)[:, :, None]
             + jnp.einsum("hno,ho->hn", hp_ref, a_d)[:, None, :])
    attn_ref = jax.nn.softmax(e_ref, axis=-1)
    ref = jnp.einsum("hij,hjo->hio", attn_ref, hp_ref).reshape(N, H * F_out)

    assert out.shape == (N, H * F_out)
    assert bool(jnp.allclose(out, ref, rtol=2e-2, atol=2e-2))
    print("KERNEL_OK")
</pallas_src>

<mosaic_0001>
module attributes {stable_mosaic.version = 11 : i64} {
  func.func @gat_fused_kernel(%arg0: memref<8x64xbf16, #tpu.memory_space<vmem>>, %arg1: memref<64x128xbf16, #tpu.memory_space<vmem>>, %arg2: memref<64x4xbf16, #tpu.memory_space<vmem>>, %arg3: memref<4x64xbf16, #tpu.memory_space<vmem>>, %arg4: memref<8x128xf32, #tpu.memory_space<vmem>>) attributes {dimension_semantics = [], scalar_prefetch = 0 : i64, scratch_operands = 0 : i64, tpu.core_type = #tpu.core_type<tc>} {
    %c0 = arith.constant 0 : index
    %c0_0 = arith.constant 0 : index
    %0 = vector.load %arg0[%c0, %c0_0] : memref<8x64xbf16, #tpu.memory_space<vmem>>, vector<8x64xbf16>
    %c0_1 = arith.constant 0 : index
    %c0_2 = arith.constant 0 : index
    %1 = vector.load %arg1[%c0_1, %c0_2] : memref<64x128xbf16, #tpu.memory_space<vmem>>, vector<64x128xbf16>
    %cst = arith.constant dense<0.000000e+00> : vector<8x128xf32>
    %2 = tpu.matmul %0, %1, %cst {dimension_numbers = #tpu.dot_dimension_numbers<[1], [0], [0], [1], [0, 0, 1, 1], [], []>} : vector<8x64xbf16>, vector<64x128xbf16>, vector<8x128xf32> -> vector<8x128xf32>
    %c0_3 = arith.constant 0 : index
    %c0_4 = arith.constant 0 : index
    %3 = vector.load %arg2[%c0_3, %c0_4] : memref<64x4xbf16, #tpu.memory_space<vmem>>, vector<64x4xbf16>
    %cst_5 = arith.constant dense<0.000000e+00> : vector<8x4xf32>
    %4 = tpu.matmul %0, %3, %cst_5 {dimension_numbers = #tpu.dot_dimension_numbers<[1], [0], [0], [1], [0, 0, 1, 1], [], []>} : vector<8x64xbf16>, vector<64x4xbf16>, vector<8x4xf32> -> vector<8x4xf32>
    %c0_6 = arith.constant 0 : index
    %c0_7 = arith.constant 0 : index
    %5 = vector.load %arg3[%c0_6, %c0_7] : memref<4x64xbf16, #tpu.memory_space<vmem>>, vector<4x64xbf16>
    %cst_8 = arith.constant dense<0.000000e+00> : vector<4x8xf32>
    %6 = tpu.matmul %5, %0, %cst_8 {dimension_numbers = #tpu.dot_dimension_numbers<[1], [1], [0], [0], [0, 0, 1, 0], [], []>} : vector<4x64xbf16>, vector<8x64xbf16>, vector<4x8xf32> -> vector<4x8xf32>
    %7 = arith.truncf %2 : vector<8x128xf32> to vector<8x128xbf16>
    %8 = vector.extract_strided_slice %4 {offsets = [0, 0], sizes = [8, 1], strides = [1, 1]} : vector<8x4xf32> to vector<8x1xf32>
    %9 = vector.extract_strided_slice %6 {offsets = [0, 0], sizes = [1, 8], strides = [1, 1]} : vector<4x8xf32> to vector<1x8xf32>
    %10 = vector.broadcast %8 : vector<8x1xf32> to vector<8x8xf32>
    %11 = vector.broadcast %9 : vector<1x8xf32> to vector<8x8xf32>
    %12 = arith.addf %10, %11 : vector<8x8xf32>
    %cst_9 = arith.constant dense<0xFF800000> : vector<8xf32>
    %13 = vector.multi_reduction <maximumf>, %12, %cst_9 [1] : vector<8x8xf32> to vector<8xf32>
    %14 = vector.shape_cast %13 : vector<8xf32> to vector<8x1xf32>
    %15 = vector.broadcast %14 : vector<8x1xf32> to vector<8x8xf32>
    %16 = arith.subf %12, %15 : vector<8x8xf32>
    %17 = math.exp %16 : vector<8x8xf32>
    %cst_10 = arith.constant dense<0.000000e+00> : vector<8xf32>
    %18 = vector.multi_reduction <add>, %17, %cst_10 [1] : vector<8x8xf32> to vector<8xf32>
    %19 = vector.shape_cast %18 : vector<8xf32> to vector<8x1xf32>
    %20 = tpu.reciprocal %19 {approx = true} : vector<8x1xf32> -> vector<8x1xf32>
    %21 = vector.broadcast %20 : vector<8x1xf32> to vector<8x8xf32>
    %22 = arith.mulf %17, %21 : vector<8x8xf32>
    %23 = vector.extract_strided_slice %7 {offsets = [0, 0], sizes = [8, 32], strides = [1, 1]} : vector<8x128xbf16> to vector<8x32xbf16>
    %24 = arith.truncf %22 : vector<8x8xf32> to vector<8x8xbf16>
    %cst_11 = arith.constant dense<0.000000e+00> : vector<8x32xf32>
    %25 = tpu.matmul %24, %23, %cst_11 {dimension_numbers = #tpu.dot_dimension_numbers<[1], [0], [0], [1], [0, 0, 1, 1], [], []>} : vector<8x8xbf16>, vector<8x32xbf16>, vector<8x32xf32> -> vector<8x32xf32>
    %26 = vector.extract_strided_slice %4 {offsets = [0, 1], sizes = [8, 1], strides = [1, 1]} : vector<8x4xf32> to vector<8x1xf32>
    %27 = vector.extract_strided_slice %6 {offsets = [1, 0], sizes = [1, 8], strides = [1, 1]} : vector<4x8xf32> to vector<1x8xf32>
    %28 = vector.broadcast %26 : vector<8x1xf32> to vector<8x8xf32>
    %29 = vector.broadcast %27 : vector<1x8xf32> to vector<8x8xf32>
    %30 = arith.addf %28, %29 : vector<8x8xf32>
    %cst_12 = arith.constant dense<0xFF800000> : vector<8xf32>
    %31 = vector.multi_reduction <maximumf>, %30, %cst_12 [1] : vector<8x8xf32> to vector<8xf32>
    %32 = vector.shape_cast %31 : vector<8xf32> to vector<8x1xf32>
    %33 = vector.broadcast %32 : vector<8x1xf32> to vector<8x8xf32>
    %34 = arith.subf %30, %33 : vector<8x8xf32>
    %35 = math.exp %34 : vector<8x8xf32>
    %cst_13 = arith.constant dense<0.000000e+00> : vector<8xf32>
    %36 = vector.multi_reduction <add>, %35, %cst_13 [1] : vector<8x8xf32> to vector<8xf32>
    %37 = vector.shape_cast %36 : vector<8xf32> to vector<8x1xf32>
    %38 = tpu.reciprocal %37 {approx = true} : vector<8x1xf32> -> vector<8x1xf32>
    %39 = vector.broadcast %38 : vector<8x1xf32> to vector<8x8xf32>
    %40 = arith.mulf %35, %39 : vector<8x8xf32>
    %41 = vector.extract_strided_slice %7 {offsets = [0, 32], sizes = [8, 32], strides = [1, 1]} : vector<8x128xbf16> to vector<8x32xbf16>
    %42 = arith.truncf %40 : vector<8x8xf32> to vector<8x8xbf16>
    %cst_14 = arith.constant dense<0.000000e+00> : vector<8x32xf32>
    %43 = tpu.matmul %42, %41, %cst_14 {dimension_numbers = #tpu.dot_dimension_numbers<[1], [0], [0], [1], [0, 0, 1, 1], [], []>} : vector<8x8xbf16>, vector<8x32xbf16>, vector<8x32xf32> -> vector<8x32xf32>
    %44 = vector.extract_strided_slice %4 {offsets = [0, 2], sizes = [8, 1], strides = [1, 1]} : vector<8x4xf32> to vector<8x1xf32>
    %45 = vector.extract_strided_slice %6 {offsets = [2, 0], sizes = [1, 8], strides = [1, 1]} : vector<4x8xf32> to vector<1x8xf32>
    %46 = vector.broadcast %44 : vector<8x1xf32> to vector<8x8xf32>
    %47 = vector.broadcast %45 : vector<1x8xf32> to vector<8x8xf32>
    %48 = arith.addf %46, %47 : vector<8x8xf32>
    %cst_15 = arith.constant dense<0xFF800000> : vector<8xf32>
    %49 = vector.multi_reduction <maximumf>, %48, %cst_15 [1] : vector<8x8xf32> to vector<8xf32>
    %50 = vector.shape_cast %49 : vector<8xf32> to vector<8x1xf32>
    %51 = vector.broadcast %50 : vector<8x1xf32> to vector<8x8xf32>
    %52 = arith.subf %48, %51 : vector<8x8xf32>
    %53 = math.exp %52 : vector<8x8xf32>
    %cst_16 = arith.constant dense<0.000000e+00> : vector<8xf32>
    %54 = vector.multi_reduction <add>, %53, %cst_16 [1] : vector<8x8xf32> to vector<8xf32>
    %55 = vector.shape_cast %54 : vector<8xf32> to vector<8x1xf32>
    %56 = tpu.reciprocal %55 {approx = true} : vector<8x1xf32> -> vector<8x1xf32>
    %57 = vector.broadcast %56 : vector<8x1xf32> to vector<8x8xf32>
    %58 = arith.mulf %53, %57 : vector<8x8xf32>
    %59 = vector.extract_strided_slice %7 {offsets = [0, 64], sizes = [8, 32], strides = [1, 1]} : vector<8x128xbf16> to vector<8x32xbf16>
    %60 = arith.truncf %58 : vector<8x8xf32> to vector<8x8xbf16>
    %cst_17 = arith.constant dense<0.000000e+00> : vector<8x32xf32>
    %61 = tpu.matmul %60, %59, %cst_17 {dimension_numbers = #tpu.dot_dimension_numbers<[1], [0], [0], [1], [0, 0, 1, 1], [], []>} : vector<8x8xbf16>, vector<8x32xbf16>, vector<8x32xf32> -> vector<8x32xf32>
    %62 = vector.extract_strided_slice %4 {offsets = [0, 3], sizes = [8, 1], strides = [1, 1]} : vector<8x4xf32> to vector<8x1xf32>
    %63 = vector.extract_strided_slice %6 {offsets = [3, 0], sizes = [1, 8], strides = [1, 1]} : vector<4x8xf32> to vector<1x8xf32>
    %64 = vector.broadcast %62 : vector<8x1xf32> to vector<8x8xf32>
    %65 = vector.broadcast %63 : vector<1x8xf32> to vector<8x8xf32>
    %66 = arith.addf %64, %65 : vector<8x8xf32>
    %cst_18 = arith.constant dense<0xFF800000> : vector<8xf32>
    %67 = vector.multi_reduction <maximumf>, %66, %cst_18 [1] : vector<8x8xf32> to vector<8xf32>
    %68 = vector.shape_cast %67 : vector<8xf32> to vector<8x1xf32>
    %69 = vector.broadcast %68 : vector<8x1xf32> to vector<8x8xf32>
    %70 = arith.subf %66, %69 : vector<8x8xf32>
    %71 = math.exp %70 : vector<8x8xf32>
    %cst_19 = arith.constant dense<0.000000e+00> : vector<8xf32>
    %72 = vector.multi_reduction <add>, %71, %cst_19 [1] : vector<8x8xf32> to vector<8xf32>
    %73 = vector.shape_cast %72 : vector<8xf32> to vector<8x1xf32>
    %74 = tpu.reciprocal %73 {approx = true} : vector<8x1xf32> -> vector<8x1xf32>
    %75 = vector.broadcast %74 : vector<8x1xf32> to vector<8x8xf32>
    %76 = arith.mulf %71, %75 : vector<8x8xf32>
    %77 = vector.extract_strided_slice %7 {offsets = [0, 96], sizes = [8, 32], strides = [1, 1]} : vector<8x128xbf16> to vector<8x32xbf16>
    %78 = arith.truncf %76 : vector<8x8xf32> to vector<8x8xbf16>
    %cst_20 = arith.constant dense<0.000000e+00> : vector<8x32xf32>
    %79 = tpu.matmul %78, %77, %cst_20 {dimension_numbers = #tpu.dot_dimension_numbers<[1], [0], [0], [1], [0, 0, 1, 1], [], []>} : vector<8x8xbf16>, vector<8x32xbf16>, vector<8x32xf32> -> vector<8x32xf32>
    %80 = tpu.concatenate %25, %43, %61, %79 in 1 : vector<8x32xf32>, vector<8x32xf32>, vector<8x32xf32>, vector<8x32xf32> -> vector<8x128xf32>
    %c0_21 = arith.constant 0 : index
    %c0_22 = arith.constant 0 : index
    %81 = vector.load %arg4[%c0_21, %c0_22] : memref<8x128xf32, #tpu.memory_space<vmem>>, vector<8x128xf32>
    tpu.vector_store %arg4[%c0_21, %c0_22], %80 {strides = array<i32>} : memref<8x128xf32, #tpu.memory_space<vmem>>, vector<8x128xf32>,
    return
  }
}

</mosaic_0001>

<llo_original>
// kernel: gat_forward.1
$region0: #{gat_forward.1}
  #allocation0 [shape = 'u32[]', space=smem, size = 0x4, offset = 0x4, fixed_abs, tag = 'smem constant byte address 0x4 - core index']
  #allocation1 [shape = 'u32[144,128]{1,0:T(1,128)}', space=vmem, size = 0x12000, scoped, tag = 'internal scratch']
  %s0 = inlined_call_operand.vmem [shape: bf16[8,64], index: 0, kind: input, shape index: {}]
  %s1 = inlined_call_operand.vmem [shape: bf16[64,128], index: 1, kind: input, shape index: {}]
  %s2 = inlined_call_operand.vmem [shape: bf16[64,4], index: 2, kind: input, shape index: {}]
  %s3 = inlined_call_operand.vmem [shape: bf16[4,64], index: 3, kind: input, shape index: {}]
  %s4 = inlined_call_operand.vmem [shape: f32[8,128], index: 4, kind: output, shape index: {}]
  %s5 = sld [smem:[#allocation0]]
  $region26: #{gat_forward.1} parent=0
    _
  %s7 = ssub.s32 1, %s5
  %s8 = scalar_select 0, %s7, %s5
  // Predicated region
  $region2: #{gat_forward.1} parent=0 // pred_check
    _
  $region3: #{gat_forward.1} parent=0 // pred_check_branch
    %10 = sbr.rel (0) target = $region5
  $region4: #{gat_forward.1} parent=0 // pred_region
    _
  $region5: #{gat_forward.1} parent=0 // pred_fallthru
    _
  // Predicated region
  $region6: #{gat_forward.1} parent=0 // pred_check
    _
  $region7: #{gat_forward.1} parent=0 // pred_check_branch
    %12 = sbr.rel (0) target = $region9
  $region8: #{gat_forward.1} parent=0 // pred_region
    _
  $region9: #{gat_forward.1} parent=0 // pred_fallthru
    _
  // Predicated region
  $region10: #{gat_forward.1} parent=0 // pred_check
    _
  $region11: #{gat_forward.1} parent=0 // pred_check_branch
    %14 = sbr.rel (0) target = $region13
  $region12: #{gat_forward.1} parent=0 // pred_region
    _
  $region13: #{gat_forward.1} parent=0 // pred_fallthru
    _
  // Predicated region
  $region14: #{gat_forward.1} parent=0 // pred_check
    _
  $region15: #{gat_forward.1} parent=0 // pred_check_branch
    %16 = sbr.rel (0) target = $region17
  $region16: #{gat_forward.1} parent=0 // pred_region
    _
  $region17: #{gat_forward.1} parent=0 // pred_fallthru
    _
  %v18 = vld [vmem:[%s0] sm:$0xf]
  %v19 = vld [vmem:[%s1] sm:$0xf]
  %v20 = vld [vmem:[%s1 + $0x4] sm:$0xf]
  %v21 = vld [vmem:[%s1 + $0x8] sm:$0xf]
  %v22 = vld [vmem:[%s1 + $0xc] sm:$0xf]
  %v23 = vld [vmem:[%s1 + $0x10] sm:$0xf]
  %v24 = vld [vmem:[%s1 + $0x14] sm:$0xf]
  %v25 = vld [vmem:[%s1 + $0x18] sm:$0xf]
  %v26 = vld [vmem:[%s1 + $0x1c] sm:$0xf]
  %v35 = vunpack.c.l.b16 %v19
  %v36 = vunpack.c.l.b16 %v20
  %v37 = vunpack.c.l.b16 %v21
  %v38 = vunpack.c.l.b16 %v22
  %v39 = vunpack.c.l.b16 %v23
  %v40 = vunpack.c.l.b16 %v24
  %v41 = vunpack.c.l.b16 %v25
  %v42 = vunpack.c.l.b16 %v26
  %v43 = vpack.c.b16 %v36, %v35
  %v44 = vpack.c.b16 %v38, %v37
  %v45 = vpack.c.b16 %v40, %v39
  %v46 = vpack.c.b16 %v42, %v41
  %vm51 = vcmask 523264
  %v53 = vsel %vm51, %v18, 0
  %55 = vmatprep.subr.bf16.mxu0 0
  %56 = vmatpush1.bf16.msra.mxu0 %v43
  %57 = vmatprep.subr.bf16.mxu0 0
  %58 = vmatpush1.bf16.msra.mxu0 %v44
  %59 = vmatprep.subr.bf16.mxu0 0
  %60 = vmatpush1.bf16.msra.mxu0 %v45
  %61 = vmatprep.subr.bf16.mxu0 0
  %62 = vmatpush1.bf16.msra.mxu0 %v46
  %63 = vmatprep.subr.bf16.mxu0 0
  %64 = vmatpush1.bf16.msra.mxu0 0
  %65 = vmatprep.subr.bf16.mxu0 0
  %66 = vmatpush1.bf16.msra.mxu0 0
  %67 = vmatprep.subr.bf16.mxu0 0
  %68 = vmatpush1.bf16.msra.mxu0 0
  %69 = vmatprep.subr.bf16.mxu0 0
  %70 = vmatpush1.bf16.msra.mxu0 0
  %71 = vmatprep.subr.bf16.mxu0 0
  %72 = vmatpush1.bf16.msra.mxu0 0
  %73 = vmatprep.subr.bf16.mxu0 0
  %74 = vmatpush1.bf16.msra.mxu0 0
  %75 = vmatprep.subr.bf16.mxu0 0
  %76 = vmatpush1.bf16.msra.mxu0 0
  %77 = vmatprep.subr.bf16.mxu0 0
  %78 = vmatpush1.bf16.msra.mxu0 0
  %79 = vmatprep.subr.bf16.mxu0 0
  %80 = vmatpush1.bf16.msra.mxu0 0
  %81 = vmatprep.subr.bf16.mxu0 0
  %82 = vmatpush1.bf16.msra.mxu0 0
  %83 = vmatprep.subr.bf16.mxu0 0
  %84 = vmatpush1.bf16.msra.mxu0 0
  %85 = vmatprep.subr.bf16.mxu0 0
  %86 = vmatpush1.bf16.msra.mxu0 0
  %87 = vmatprep.mubr.bf16.mxu0 0
  %88 = vmatmul.mubr.bf16.gmra.mrb[0].mxu0 %v53
  %v89 = vpop.f32.mrb[0].mxu0
  %v90 = vadd.f32 0.0, %v89
  %v91 = vpop.f32.mrb[0].mxu0
  %v92 = vpop.f32.mrb[0].mxu0
  %v93 = vpop.f32.mrb[0].mxu0
  %94 = vdwg.mxu0
  %v95 = vld [vmem:[%s2] sm:$0xf]
  %v96 = vld [vmem:[%s2 + $0x4] sm:$0xf]
  %v97 = vld [vmem:[%s2 + $0x8] sm:$0xf]
  %v98 = vld [vmem:[%s2 + $0xc] sm:$0xf]
  %v99 = vld [vmem:[%s2 + $0x10] sm:$0xf]
  %v100 = vld [vmem:[%s2 + $0x14] sm:$0xf]
  %v101 = vld [vmem:[%s2 + $0x18] sm:$0xf]
  %v102 = vld [vmem:[%s2 + $0x1c] sm:$0xf]
  %v111 = vunpack.c.l.b16 %v95
  %v112 = vunpack.c.l.b16 %v96
  %v113 = vunpack.c.l.b16 %v97
  %v114 = vunpack.c.l.b16 %v98
  %v115 = vunpack.c.l.b16 %v99
  %v116 = vunpack.c.l.b16 %v100
  %v117 = vunpack.c.l.b16 %v101
  %v118 = vunpack.c.l.b16 %v102
  %v119 = vpack.c.b16 %v112, %v111
  %v120 = vpack.c.b16 %v114, %v113
  %v121 = vpack.c.b16 %v116, %v115
  %v122 = vpack.c.b16 %v118, %v117
  %127 = vmatprep.subr.bf16.mxu0 0
  %128 = vmatpush1.bf16.msra.mxu0 %v119
  %129 = vmatprep.subr.bf16.mxu0 0
  %130 = vmatpush1.bf16.msra.mxu0 %v120
  %131 = vmatprep.subr.bf16.mxu0 0
  %132 = vmatpush1.bf16.msra.mxu0 %v121
  %133 = vmatprep.subr.bf16.mxu0 0
  %134 = vmatpush1.bf16.msra.mxu0 %v122
  %135 = vmatprep.subr.bf16.mxu0 0
  %136 = vmatpush1.bf16.msra.mxu0 0
  %137 = vmatprep.subr.bf16.mxu0 0
  %138 = vmatpush1.bf16.msra.mxu0 0
  %139 = vmatprep.subr.bf16.mxu0 0
  %140 = vmatpush1.bf16.msra.mxu0 0
  %141 = vmatprep.subr.bf16.mxu0 0
  %142 = vmatpush1.bf16.msra.mxu0 0
  %143 = vmatprep.subr.bf16.mxu0 0
  %144 = vmatpush1.bf16.msra.mxu0 0
  %145 = vmatprep.subr.bf16.mxu0 0
  %146 = vmatpush1.bf16.msra.mxu0 0
  %147 = vmatprep.subr.bf16.mxu0 0
  %148 = vmatpush1.bf16.msra.mxu0 0
  %149 = vmatprep.subr.bf16.mxu0 0
  %150 = vmatpush1.bf16.msra.mxu0 0
  %151 = vmatprep.subr.bf16.mxu0 0
  %152 = vmatpush1.bf16.msra.mxu0 0
  %153 = vmatprep.subr.bf16.mxu0 0
  %154 = vmatpush1.bf16.msra.mxu0 0
  %155 = vmatprep.subr.bf16.mxu0 0
  %156 = vmatpush1.bf16.msra.mxu0 0
  %157 = vmatprep.subr.bf16.mxu0 0
  %158 = vmatpush1.bf16.msra.mxu0 0
  %159 = vmatprep.mubr.bf16.mxu0 0
  %160 = vmatmul.mubr.bf16.gmra.mrb[0].mxu0 %v53
  %v161 = vpop.f32.mrb[0].mxu0
  %v162 = vadd.f32 0.0, %v161
  %v163 = vpop.f32.mrb[0].mxu0
  %v164 = vpop.f32.mrb[0].mxu0
  %v165 = vpop.f32.mrb[0].mxu0
  %166 = vdwg.mxu0
  %v167 = vld [vmem:[%s3] sm:$0x3]
  %v169 = vsel %vm51, %v167, 0
  %171 = vmatprep.subr.bf16.mxu0 0
  %172 = vmatpush1.bf16.xpose.msra.mxu0 %v53
  %173 = vmatprep.subr.bf16.mxu0 0
  %174 = vmatpush1.bf16.xpose.msra.mxu0 0
  %175 = vmatprep.subr.bf16.mxu0 0
  %176 = vmatpush1.bf16.xpose.msra.mxu0 0
  %177 = vmatprep.subr.bf16.mxu0 0
  %178 = vmatpush1.bf16.xpose.msra.mxu0 0
  %179 = vmatprep.subr.bf16.mxu0 0
  %180 = vmatpush1.bf16.xpose.msra.mxu0 0
  %181 = vmatprep.subr.bf16.mxu0 0
  %182 = vmatpush1.bf16.xpose.msra.mxu0 0
  %183 = vmatprep.subr.bf16.mxu0 0
  %184 = vmatpush1.bf16.xpose.msra.mxu0 0
  %185 = vmatprep.subr.bf16.mxu0 0
  %186 = vmatpush1.bf16.xpose.msra.mxu0 0
  %187 = vmatprep.subr.bf16.mxu0 0
  %188 = vmatpush1.bf16.xpose.msra.mxu0 0
  %189 = vmatprep.subr.bf16.mxu0 0
  %190 = vmatpush1.bf16.xpose.msra.mxu0 0
  %191 = vmatprep.subr.bf16.mxu0 0
  %192 = vmatpush1.bf16.xpose.msra.mxu0 0
  %193 = vmatprep.subr.bf16.mxu0 0
  %194 = vmatpush1.bf16.xpose.msra.mxu0 0
  %195 = vmatprep.subr.bf16.mxu0 0
  %196 = vmatpush1.bf16.xpose.msra.mxu0 0
  %197 = vmatprep.subr.bf16.mxu0 0
  %198 = vmatpush1.bf16.xpose.msra.mxu0 0
  %199 = vmatprep.subr.bf16.mxu0 0
  %200 = vmatpush1.bf16.xpose.msra.mxu0 0
  %201 = vmatprep.subr.bf16.mxu0 0
  %202 = vmatpush1.bf16.xpose.msra.mxu0 0
  %203 = vmatprep.mubr.bf16.mxu0 0
  %204 = vmatmul.mubr.bf16.gmra.mrb[0].mxu0 %v169
  %v205 = vpop.f32.mrb[0].mxu0
  %v206 = vadd.f32 0.0, %v205
  %v207 = vpop.f32.mrb[0].mxu0
  %v208 = vpop.f32.mrb[0].mxu0
  %v209 = vpop.f32.mrb[0].mxu0
  %210 = vdwg.mxu0
  %v211 = vpack.c.bf16 %v90, %v90
  %213 = vset.pattern.permute.xlu0 0
  %214 = vperm.xlu0 %213, %v162
  %v215 = vpop.permute.xlu0 %214
  %v217 = vlaneseq
  %v218 = vshrl.u32 %v217, 7
  %v219 = vsub.s32 0, %v218
  %v220 = vrot.slane %v206, %v219
  %v221 = vadd.f32 %v215, %v220
  %vm222 = vcmask 64512
  %v223 = vsel %vm222, %v221, -inf
  %224 = vmax.xlane.f32.xlu0 %v223
  %v225 = vpop.xlane.xlu0 %224
  %v226 = vsub.f32 %v221, %v225
  %v227 = vmul.f32 %v226, 1.442695
  %v228 = vpow.pop %v227
  %v229 = vsel %vm222, %v228, 0.0
  %230 = vadd.xlane.f32.xlu0 %v229
  %v231 = vpop.xlane.xlu0 %230
  %v232 = vrcp.pop %v231
  %v233 = vmul.f32 %v228, %v232
  %v234 = vpack.c.bf16 %v233, %v233
  %v236 = vsel %vm222, %v234, 0
  %vm238 = vcmask 1043456
  %v240 = vsel %vm238, %v211, 0
  %242 = vmatprep.subr.bf16.mxu0 0
  %243 = vmatpush1.bf16.msra.mxu0 %v240
  %244 = vmatprep.subr.bf16.mxu0 0
  %245 = vmatpush1.bf16.msra.mxu0 0
  %246 = vmatprep.subr.bf16.mxu0 0
  %247 = vmatpush1.bf16.msra.mxu0 0
  %248 = vmatprep.subr.bf16.mxu0 0
  %249 = vmatpush1.bf16.msra.mxu0 0
  %250 = vmatprep.subr.bf16.mxu0 0
  %251 = vmatpush1.bf16.msra.mxu0 0
  %252 = vmatprep.subr.bf16.mxu0 0
  %253 = vmatpush1.bf16.msra.mxu0 0
  %254 = vmatprep.subr.bf16.mxu0 0
  %255 = vmatpush1.bf16.msra.mxu0 0
  %256 = vmatprep.subr.bf16.mxu0 0
  %257 = vmatpush1.bf16.msra.mxu0 0
  %258 = vmatprep.subr.bf16.mxu0 0
  %259 = vmatpush1.bf16.msra.mxu0 0
  %260 = vmatprep.subr.bf16.mxu0 0
  %261 = vmatpush1.bf16.msra.mxu0 0
  %262 = vmatprep.subr.bf16.mxu0 0
  %263 = vmatpush1.bf16.msra.mxu0 0
  %264 = vmatprep.subr.bf16.mxu0 0
  %265 = vmatpush1.bf16.msra.mxu0 0
  %266 = vmatprep.subr.bf16.mxu0 0
  %267 = vmatpush1.bf16.msra.mxu0 0
  %268 = vmatprep.subr.bf16.mxu0 0
  %269 = vmatpush1.bf16.msra.mxu0 0
  %270 = vmatprep.subr.bf16.mxu0 0
  %271 = vmatpush1.bf16.msra.mxu0 0
  %272 = vmatprep.subr.bf16.mxu0 0
  %273 = vmatpush1.bf16.msra.mxu0 0
  %274 = vmatprep.mubr.bf16.mxu0 0
  %275 = vmatmul.mubr.bf16.gmra.mrb[0].mxu0 %v236
  %v276 = vpop.f32.mrb[0].mxu0
  %v277 = vadd.f32 0.0, %v276
  %v278 = vpop.f32.mrb[0].mxu0
  %v279 = vpop.f32.mrb[0].mxu0
  %v280 = vpop.f32.mrb[0].mxu0
  %281 = vdwg.mxu0
  %282 = vset.pattern.permute.xlu0 1
  %283 = vperm.xlu0 %282, %v162
  %v284 = vpop.permute.xlu0 %283
  %v286 = vlaneseq
  %v287 = vshrl.u32 %v286, 7
  %v288 = vsub.s32 1, %v287
  %v289 = vrot.slane %v206, %v288
  %v290 = vadd.f32 %v284, %v289
  %v291 = vsel %vm222, %v290, -inf
  %292 = vmax.xlane.f32.xlu0 %v291
  %v293 = vpop.xlane.xlu0 %292
  %v294 = vsub.f32 %v290, %v293
  %v295 = vmul.f32 %v294, 1.442695
  %v296 = vpow.pop %v295
  %v297 = vsel %vm222, %v296, 0.0
  %298 = vadd.xlane.f32.xlu0 %v297
  %v299 = vpop.xlane.xlu0 %298
  %v300 = vrcp.pop %v299
  %v301 = vmul.f32 %v296, %v300
  %v302 = vpack.c.bf16 %v301, %v301
  %304 = vrot.lane.b32.xlu0 %v211, 96
  %v305 = vpop.permute.xlu0 %304
  %v307 = vsel %vm222, %v302, 0
  %v310 = vsel %vm238, %v305, 0
  %312 = vmatprep.subr.bf16.mxu0 0
  %313 = vmatpush1.bf16.msra.mxu0 %v310
  %314 = vmatprep.subr.bf16.mxu0 0
  %315 = vmatpush1.bf16.msra.mxu0 0
  %316 = vmatprep.subr.bf16.mxu0 0
  %317 = vmatpush1.bf16.msra.mxu0 0
  %318 = vmatprep.subr.bf16.mxu0 0
  %319 = vmatpush1.bf16.msra.mxu0 0
  %320 = vmatprep.subr.bf16.mxu0 0
  %321 = vmatpush1.bf16.msra.mxu0 0
  %322 = vmatprep.subr.bf16.mxu0 0
  %323 = vmatpush1.bf16.msra.mxu0 0
  %324 = vmatprep.subr.bf16.mxu0 0
  %325 = vmatpush1.bf16.msra.mxu0 0
  %326 = vmatprep.subr.bf16.mxu0 0
  %327 = vmatpush1.bf16.msra.mxu0 0
  %328 = vmatprep.subr.bf16.mxu0 0
  %329 = vmatpush1.bf16.msra.mxu0 0
  %330 = vmatprep.subr.bf16.mxu0 0
  %331 = vmatpush1.bf16.msra.mxu0 0
  %332 = vmatprep.subr.bf16.mxu0 0
  %333 = vmatpush1.bf16.msra.mxu0 0
  %334 = vmatprep.subr.bf16.mxu0 0
  %335 = vmatpush1.bf16.msra.mxu0 0
  %336 = vmatprep.subr.bf16.mxu0 0
  %337 = vmatpush1.bf16.msra.mxu0 0
  %338 = vmatprep.subr.bf16.mxu0 0
  %339 = vmatpush1.bf16.msra.mxu0 0
  %340 = vmatprep.subr.bf16.mxu0 0
  %341 = vmatpush1.bf16.msra.mxu0 0
  %342 = vmatprep.subr.bf16.mxu0 0
  %343 = vmatpush1.bf16.msra.mxu0 0
  %344 = vmatprep.mubr.bf16.mxu0 0
  %345 = vmatmul.mubr.bf16.gmra.mrb[0].mxu0 %v307
  %v346 = vpop.f32.mrb[0].mxu0
  %v347 = vadd.f32 0.0, %v346
  %v348 = vpop.f32.mrb[0].mxu0
  %v349 = vpop.f32.mrb[0].mxu0
  %v350 = vpop.f32.mrb[0].mxu0
  %351 = vdwg.mxu0
  %352 = vset.pattern.permute.xlu0 2
  %353 = vperm.xlu0 %352, %v162
  %v354 = vpop.permute.xlu0 %353
  %v356 = vlaneseq
  %v357 = vshrl.u32 %v356, 7
  %v358 = vsub.s32 2, %v357
  %v359 = vrot.slane %v206, %v358
  %v360 = vadd.f32 %v354, %v359
  %v361 = vsel %vm222, %v360, -inf
  %362 = vmax.xlane.f32.xlu0 %v361
  %v363 = vpop.xlane.xlu0 %362
  %v364 = vsub.f32 %v360, %v363
  %v365 = vmul.f32 %v364, 1.442695
  %v366 = vpow.pop %v365
  %v367 = vsel %vm222, %v366, 0.0
  %368 = vadd.xlane.f32.xlu0 %v367
  %v369 = vpop.xlane.xlu0 %368
  %v370 = vrcp.pop %v369
  %v371 = vmul.f32 %v366, %v370
  %v372 = vpack.c.bf16 %v371, %v371
  %373 = vrot.lane.b32.xlu0 %v211, 64
  %v374 = vpop.permute.xlu0 %373
  %v376 = vsel %vm222, %v372, 0
  %v379 = vsel %vm238, %v374, 0
  %381 = vmatprep.subr.bf16.mxu0 0
  %382 = vmatpush1.bf16.msra.mxu0 %v379
  %383 = vmatprep.subr.bf16.mxu0 0
  %384 = vmatpush1.bf16.msra.mxu0 0
  %385 = vmatprep.subr.bf16.mxu0 0
  %386 = vmatpush1.bf16.msra.mxu0 0
  %387 = vmatprep.subr.bf16.mxu0 0
  %388 = vmatpush1.bf16.msra.mxu0 0
  %389 = vmatprep.subr.bf16.mxu0 0
  %390 = vmatpush1.bf16.msra.mxu0 0
  %391 = vmatprep.subr.bf16.mxu0 0
  %392 = vmatpush1.bf16.msra.mxu0 0
  %393 = vmatprep.subr.bf16.mxu0 0
  %394 = vmatpush1.bf16.msra.mxu0 0
  %395 = vmatprep.subr.bf16.mxu0 0
  %396 = vmatpush1.bf16.msra.mxu0 0
  %397 = vmatprep.subr.bf16.mxu0 0
  %398 = vmatpush1.bf16.msra.mxu0 0
  %399 = vmatprep.subr.bf16.mxu0 0
  %400 = vmatpush1.bf16.msra.mxu0 0
  %401 = vmatprep.subr.bf16.mxu0 0
  %402 = vmatpush1.bf16.msra.mxu0 0
  %403 = vmatprep.subr.bf16.mxu0 0
  %404 = vmatpush1.bf16.msra.mxu0 0
  %405 = vmatprep.subr.bf16.mxu0 0
  %406 = vmatpush1.bf16.msra.mxu0 0
  %407 = vmatprep.subr.bf16.mxu0 0
  %408 = vmatpush1.bf16.msra.mxu0 0
  %409 = vmatprep.subr.bf16.mxu0 0
  %410 = vmatpush1.bf16.msra.mxu0 0
  %411 = vmatprep.subr.bf16.mxu0 0
  %412 = vmatpush1.bf16.msra.mxu0 0
  %413 = vmatprep.mubr.bf16.mxu0 0
  %414 = vmatmul.mubr.bf16.gmra.mrb[0].mxu0 %v376
  %v415 = vpop.f32.mrb[0].mxu0
  %v416 = vadd.f32 0.0, %v415
  %v417 = vpop.f32.mrb[0].mxu0
  %v418 = vpop.f32.mrb[0].mxu0
  %v419 = vpop.f32.mrb[0].mxu0
  %420 = vdwg.mxu0
  %421 = vset.pattern.permute.xlu0 3
  %422 = vperm.xlu0 %421, %v162
  %v423 = vpop.permute.xlu0 %422
  %v425 = vlaneseq
  %v426 = vshrl.u32 %v425, 7
  %v427 = vsub.s32 3, %v426
  %v428 = vrot.slane %v206, %v427
  %v429 = vadd.f32 %v423, %v428
  %v430 = vsel %vm222, %v429, -inf
  %431 = vmax.xlane.f32.xlu0 %v430
  %v432 = vpop.xlane.xlu0 %431
  %v433 = vsub.f32 %v429, %v432
  %v434 = vmul.f32 %v433, 1.442695
  %v435 = vpow.pop %v434
  %v436 = vsel %vm222, %v435, 0.0
  %437 = vadd.xlane.f32.xlu0 %v436
  %v438 = vpop.xlane.xlu0 %437
  %v439 = vrcp.pop %v438
  %v440 = vmul.f32 %v435, %v439
  %v441 = vpack.c.bf16 %v440, %v440
  %442 = vrot.lane.b32.xlu0 %v211, 32
  %v443 = vpop.permute.xlu0 %442
  %v445 = vsel %vm222, %v441, 0
  %v448 = vsel %vm238, %v443, 0
  %450 = vmatprep.subr.bf16.mxu0 0
  %451 = vmatpush1.bf16.msra.mxu0 %v448
  %452 = vmatprep.subr.bf16.mxu0 0
  %453 = vmatpush1.bf16.msra.mxu0 0
  %454 = vmatprep.subr.bf16.mxu0 0
  %455 = vmatpush1.bf16.msra.mxu0 0
  %456 = vmatprep.subr.bf16.mxu0 0
  %457 = vmatpush1.bf16.msra.mxu0 0
  %458 = vmatprep.subr.bf16.mxu0 0
  %459 = vmatpush1.bf16.msra.mxu0 0
  %460 = vmatprep.subr.bf16.mxu0 0
  %461 = vmatpush1.bf16.msra.mxu0 0
  %462 = vmatprep.subr.bf16.mxu0 0
  %463 = vmatpush1.bf16.msra.mxu0 0
  %464 = vmatprep.subr.bf16.mxu0 0
  %465 = vmatpush1.bf16.msra.mxu0 0
  %466 = vmatprep.subr.bf16.mxu0 0
  %467 = vmatpush1.bf16.msra.mxu0 0
  %468 = vmatprep.subr.bf16.mxu0 0
  %469 = vmatpush1.bf16.msra.mxu0 0
  %470 = vmatprep.subr.bf16.mxu0 0
  %471 = vmatpush1.bf16.msra.mxu0 0
  %472 = vmatprep.subr.bf16.mxu0 0
  %473 = vmatpush1.bf16.msra.mxu0 0
  %474 = vmatprep.subr.bf16.mxu0 0
  %475 = vmatpush1.bf16.msra.mxu0 0
  %476 = vmatprep.subr.bf16.mxu0 0
  %477 = vmatpush1.bf16.msra.mxu0 0
  %478 = vmatprep.subr.bf16.mxu0 0
  %479 = vmatpush1.bf16.msra.mxu0 0
  %480 = vmatprep.subr.bf16.mxu0 0
  %481 = vmatpush1.bf16.msra.mxu0 0
  %482 = vmatprep.mubr.bf16.mxu0 0
  %483 = vmatmul.mubr.bf16.gmra.mrb[0].mxu0 %v445
  %v484 = vpop.f32.mrb[0].mxu0
  %v485 = vadd.f32 0.0, %v484
  %v486 = vpop.f32.mrb[0].mxu0
  %v487 = vpop.f32.mrb[0].mxu0
  %v488 = vpop.f32.mrb[0].mxu0
  %489 = vdwg.mxu0
  %491 = vrot.lane.b32.xlu0 %v347, 32
  %v492 = vpop.permute.xlu0 %491
  %495 = vrot.lane.b32.xlu0 %v416, 64
  %v496 = vpop.permute.xlu0 %495
  %499 = vrot.lane.b32.xlu0 %v485, 96
  %v500 = vpop.permute.xlu0 %499
  %vm502 = vcmask 261120
  %v503 = vsel %vm502, %v277, %v492
  %v504 = vsel %vm51, %v503, %v496
  %vm505 = vcmask 785408
  %v506 = vsel %vm505, %v504, %v500
  %507 = vst [vmem:[%s4] sm:$0xff] %v506
  // Predicated region
  $region18: #{gat_forward.1} parent=0 // pred_check
    _
  $region19: #{gat_forward.1} parent=0 // pred_check_branch
    %509 = sbr.rel (0) target = $region21
  $region20: #{gat_forward.1} parent=0 // pred_region
    _
  $region21: #{gat_forward.1} parent=0 // pred_fallthru
    _
  // Predicated region
  $region22: #{gat_forward.1} parent=0 // pred_check
    _
  $region23: #{gat_forward.1} parent=0 // pred_check_branch
    %511 = sbr.rel (0) target = $region25
  $region24: #{gat_forward.1} parent=0 // pred_region
    _
  $region25: #{gat_forward.1} parent=0 // pred_fallthru
    _

</llo_original>
